<compile_context>
chip_gen: v5e
topology: v5e:2x2
jax: 0.10.0
libtpu: 0.0.40
codegen_flags: <defaults>
</compile_context>

<pallas_src>
import functools

import jax
import jax.numpy as jnp
from jax import lax
from jax.experimental import pallas as pl
from jax.experimental.pallas import tpu as pltpu


def _transformer_c_kernel(x_ref, wqkv_ref, o_ref, *, head_num, use_relu):
    # x_ref   : (Bt, N, D) input block (a tile of batch elements)
    # wqkv_ref: (D, 3D) fused [W_Q | W_K | W_V]
    # o_ref   : (Bt, N, D) output block
    Bt, N, D = x_ref.shape
    d = D // head_num
    cdt = x_ref.dtype  # MXU operand dtype (bf16 stays bf16, f32 stays f32)

    # Fused Q/K/V projection for the whole batch tile: one MXU pass with a
    # (Bt*N)-row LHS, f32 accumulation.  Collapsing (Bt, N) -> Bt*N keeps the
    # lane dim (D) untouched, so the reshape is layout-trivial.
    x2d = x_ref[...].reshape(Bt * N, D)
    qkv = jnp.dot(x2d, wqkv_ref[...], preferred_element_type=jnp.float32)  # (Bt*N, 3D)

    # Bt and head_num are small static constants here, so a static unroll is
    # fine; for large head counts this should become
    # lax.fori_loop(..., unroll=True) to bound live ranges.
    for b in range(Bt):
        rows = qkv[b * N:(b + 1) * N]  # (N, 3D) f32, static sublane slice
        heads = []
        for h in range(head_num):
            lo = h * d
            # Per-head slices of the fused projection (each element is
            # consumed exactly once, so the one-time lane extraction here is
            # as cheap as any head-major relayout would be).
            qh = rows[:, lo:lo + d].astype(cdt)                  # (N, d)
            kh = rows[:, D + lo:D + lo + d].astype(cdt)          # (N, d)
            vh = rows[:, 2 * D + lo:2 * D + lo + d].astype(cdt)  # (N, d)

            # scores = q @ k^T without materializing a transpose
            # (matches PyTorch: no 1/sqrt(d) scaling).
            s = lax.dot_general(
                qh, kh,
                dimension_numbers=(((1,), (1,)), ((), ())),
                preferred_element_type=jnp.float32,
            )                                                    # (N, N)

            # softmax over keys; denominator via the EUP approximate
            # reciprocal (free slot; loosens parity to ~1e-3).
            s = s - jnp.max(s, axis=-1, keepdims=True)
            p = jnp.exp(s)
            p = p * pl.reciprocal(jnp.sum(p, axis=-1, keepdims=True),
                                  approx=True)

            oh = jnp.dot(p.astype(cdt), vh,
                         preferred_element_type=jnp.float32)     # (N, d)
            if use_relu:
                oh = jnp.maximum(oh, 0.0)
            heads.append(oh)

        # Assemble all heads once and issue a single lane-dense (N, D) store
        # into the pipelined output block (no f32 scratch round trip, no
        # masked narrow stores).
        o_ref[b] = jnp.concatenate(heads, axis=-1).astype(o_ref.dtype)


def _pick_batch_tile(B, N, row_budget=512):
    """Largest divisor of B whose tile has at most `row_budget` rows."""
    bt = 1
    limit = max(row_budget, N)  # always allow at least one batch element
    for cand in range(1, B + 1):
        if B % cand == 0 and cand * N <= limit:
            bt = cand
    return bt


def transformer_c_forward(inputs, w_query, w_key, w_value, head_num,
                          use_relu=True, batch_tile=None):
    """Pallas implementation of TransformerC.forward.

    inputs : (B, N, D)
    w_*    : (D, D)
    returns: (B, N, D)
    """
    B, N, D = inputs.shape
    assert D % head_num == 0, "in_size must be divisible by head_num"
    d = D // head_num

    # Fuse the three projections into one (D, 3D) weight -> one MXU pass.
    w_qkv = jnp.concatenate([w_query, w_key, w_value], axis=1).astype(inputs.dtype)

    Bt = batch_tile if batch_tile is not None else _pick_batch_tile(B, N)
    assert B % Bt == 0, "batch tile must divide the batch size"

    kernel = functools.partial(
        _transformer_c_kernel, head_num=head_num, use_relu=use_relu
    )

    itemsize = jnp.dtype(inputs.dtype).itemsize
    # Working set (double-buffering counted once, no extra x2 at the end).
    working_set = (
        2 * Bt * N * D * itemsize        # double-buffered input block
        + 2 * Bt * N * D * itemsize      # double-buffered output block
        + 2 * D * 3 * D * itemsize       # double-buffered fused weight
        + Bt * N * 3 * D * 4             # f32 qkv value (worst case spilled)
        + 4 * N * N * 4                  # per-head score/prob temporaries
    )
    try:
        vmem_cap = pltpu.get_tpu_info().vmem_capacity_bytes
    except Exception:  # pragma: no cover - conservative fallback
        vmem_cap = 128 * 1024 * 1024
    # Leave ~20% headroom for compiler-internal scratch (v7x: ~51 MiB cap;
    # v5e/v6e: ~102 MiB, i.e. no premature 64 MiB clamp).
    vmem_limit = int(min(0.8 * vmem_cap,
                         max(16 * 1024 * 1024, working_set + (8 << 20))))

    flops = 2 * B * N * D * (3 * D) + 4 * B * head_num * N * N * d
    cost = pl.CostEstimate(
        flops=flops,
        transcendentals=B * head_num * N * N,
        bytes_accessed=2 * B * N * D * itemsize + 3 * D * D * itemsize,
    )

    return pl.pallas_call(
        kernel,
        out_shape=jax.ShapeDtypeStruct((B, N, D), inputs.dtype),
        grid_spec=pltpu.PrefetchScalarGridSpec(
            num_scalar_prefetch=0,
            grid=(B // Bt,),
            in_specs=[
                pl.BlockSpec((Bt, N, D), lambda i: (i, 0, 0)),   # inputs tile
                pl.BlockSpec((D, 3 * D), lambda i: (0, 0)),      # fused W_QKV
            ],
            out_specs=pl.BlockSpec((Bt, N, D), lambda i: (i, 0, 0)),
        ),
        compiler_params=pltpu.CompilerParams(
            dimension_semantics=("parallel",),
            vmem_limit_bytes=vmem_limit,
        ),
        cost_estimate=cost,
    )(inputs, w_qkv)


def transformer_c_reference(inputs, w_query, w_key, w_value, head_num,
                            use_relu=True):
    """Pure-JAX reference mirroring the PyTorch forward exactly."""
    d = inputs.shape[-1] // head_num
    keys = jnp.tensordot(inputs, w_key, axes=([-1], [0]))
    values = jnp.tensordot(inputs, w_value, axes=([-1], [0]))
    query = jnp.tensordot(inputs, w_query, axes=([-1], [0]))

    def split_stack(x):
        # torch.stack(torch.split(x, d, dim=2)) -> (H, B, N, d)
        return jnp.stack(jnp.split(x, head_num, axis=2), axis=0)

    q = split_stack(query)
    k = split_stack(keys)
    v = split_stack(values)
    inner = jnp.einsum('bnik,bnjk->bnij', q, k)
    att = jax.nn.softmax(inner, axis=-1)
    res = jnp.matmul(att, v)                                        # (H,B,N,d)
    res = jnp.concatenate(jnp.split(res, head_num, axis=0), axis=-1)
    res = jnp.squeeze(res, axis=0)                                  # (B,N,D)
    if use_relu:
        res = jax.nn.relu(res)
    return res


if __name__ == "__main__":
    B, N, D, H = 2, 8, 32, 4   # batch, seq (shots), in_size, head_num

    key = jax.random.PRNGKey(0)
    k_x, k_q, k_k, k_v = jax.random.split(key, 4)

    inputs = jax.random.normal(k_x, (B, N, D), dtype=jnp.float32)
    # nn.init.normal_(tensor, mean=0.0, std=0.05)
    w_query = 0.05 * jax.random.normal(k_q, (D, D), dtype=jnp.float32)
    w_key = 0.05 * jax.random.normal(k_k, (D, D), dtype=jnp.float32)
    w_value = 0.05 * jax.random.normal(k_v, (D, D), dtype=jnp.float32)

    out = transformer_c_forward(inputs, w_query, w_key, w_value, H,
                                use_relu=True)
    out = jax.block_until_ready(out)

    ref = transformer_c_reference(inputs, w_query, w_key, w_value, H,
                                  use_relu=True)
    assert out.shape == (B, N, D)
    # tolerance accounts for the EUP approximate reciprocal in the softmax
    assert jnp.allclose(out, ref, atol=2e-3, rtol=2e-3), "mismatch vs reference"

    print("KERNEL_OK")
</pallas_src>

<mosaic_0001>
module attributes {stable_mosaic.version = 11 : i64} {
  func.func @_transformer_c_kernel(%arg0: i32, %arg1: memref<2x8x32xf32, #tpu.memory_space<vmem>>, %arg2: memref<32x96xf32, #tpu.memory_space<vmem>>, %arg3: memref<2x8x32xf32, #tpu.memory_space<vmem>>) attributes {dimension_semantics = [#tpu.dimension_semantics<parallel>], iteration_bounds = array<i64: 1>, scalar_prefetch = 0 : i64, scratch_operands = 0 : i64, tpu.core_type = #tpu.core_type<tc>, window_params = [{transform_indices = @transform_0, window_bounds = array<i64: 2, 8, 32>}, {pipeline_mode = #tpu.pipeline_mode<synchronous>, transform_indices = @transform_1, window_bounds = array<i64: 32, 96>}, {transform_indices = @transform_2, window_bounds = array<i64: 2, 8, 32>}]} {
    %c0 = arith.constant 0 : index
    %c0_0 = arith.constant 0 : index
    %c0_1 = arith.constant 0 : index
    %0 = vector.load %arg1[%c0, %c0_0, %c0_1] : memref<2x8x32xf32, #tpu.memory_space<vmem>>, vector<2x8x32xf32>
    %1 = vector.shape_cast %0 : vector<2x8x32xf32> to vector<16x32xf32>
    %c0_2 = arith.constant 0 : index
    %c0_3 = arith.constant 0 : index
    %2 = vector.load %arg2[%c0_2, %c0_3] : memref<32x96xf32, #tpu.memory_space<vmem>>, vector<32x96xf32>
    %cst = arith.constant dense<0.000000e+00> : vector<16x96xf32>
    %3 = tpu.matmul %1, %2, %cst {dimension_numbers = #tpu.dot_dimension_numbers<[1], [0], [0], [1], [0, 0, 1, 1], [], []>} : vector<16x32xf32>, vector<32x96xf32>, vector<16x96xf32> -> vector<16x96xf32>
    %4 = vector.extract_strided_slice %3 {offsets = [0, 0], sizes = [8, 96], strides = [1, 1]} : vector<16x96xf32> to vector<8x96xf32>
    %5 = vector.extract_strided_slice %4 {offsets = [0, 0], sizes = [8, 8], strides = [1, 1]} : vector<8x96xf32> to vector<8x8xf32>
    %6 = vector.extract_strided_slice %4 {offsets = [0, 32], sizes = [8, 8], strides = [1, 1]} : vector<8x96xf32> to vector<8x8xf32>
    %7 = vector.extract_strided_slice %4 {offsets = [0, 64], sizes = [8, 8], strides = [1, 1]} : vector<8x96xf32> to vector<8x8xf32>
    %cst_4 = arith.constant dense<0.000000e+00> : vector<8x8xf32>
    %8 = tpu.matmul %5, %6, %cst_4 {dimension_numbers = #tpu.dot_dimension_numbers<[1], [1], [0], [0], [0, 0, 1, 0], [], []>} : vector<8x8xf32>, vector<8x8xf32>, vector<8x8xf32> -> vector<8x8xf32>
    %cst_5 = arith.constant dense<0xFF800000> : vector<8xf32>
    %9 = vector.multi_reduction <maximumf>, %8, %cst_5 [1] : vector<8x8xf32> to vector<8xf32>
    %10 = vector.shape_cast %9 : vector<8xf32> to vector<8x1xf32>
    %11 = vector.broadcast %10 : vector<8x1xf32> to vector<8x8xf32>
    %12 = arith.subf %8, %11 : vector<8x8xf32>
    %13 = math.exp %12 : vector<8x8xf32>
    %cst_6 = arith.constant dense<0.000000e+00> : vector<8xf32>
    %14 = vector.multi_reduction <add>, %13, %cst_6 [1] : vector<8x8xf32> to vector<8xf32>
    %15 = vector.shape_cast %14 : vector<8xf32> to vector<8x1xf32>
    %16 = tpu.reciprocal %15 {approx = true} : vector<8x1xf32> -> vector<8x1xf32>
    %17 = vector.broadcast %16 : vector<8x1xf32> to vector<8x8xf32>
    %18 = arith.mulf %13, %17 : vector<8x8xf32>
    %cst_7 = arith.constant dense<0.000000e+00> : vector<8x8xf32>
    %19 = tpu.matmul %18, %7, %cst_7 {dimension_numbers = #tpu.dot_dimension_numbers<[1], [0], [0], [1], [0, 0, 1, 1], [], []>} : vector<8x8xf32>, vector<8x8xf32>, vector<8x8xf32> -> vector<8x8xf32>
    %cst_8 = arith.constant 0.000000e+00 : f32
    %20 = vector.broadcast %cst_8 : f32 to vector<8x8xf32>
    %21 = arith.maximumf %19, %20 : vector<8x8xf32>
    %22 = vector.extract_strided_slice %4 {offsets = [0, 8], sizes = [8, 8], strides = [1, 1]} : vector<8x96xf32> to vector<8x8xf32>
    %23 = vector.extract_strided_slice %4 {offsets = [0, 40], sizes = [8, 8], strides = [1, 1]} : vector<8x96xf32> to vector<8x8xf32>
    %24 = vector.extract_strided_slice %4 {offsets = [0, 72], sizes = [8, 8], strides = [1, 1]} : vector<8x96xf32> to vector<8x8xf32>
    %cst_9 = arith.constant dense<0.000000e+00> : vector<8x8xf32>
    %25 = tpu.matmul %22, %23, %cst_9 {dimension_numbers = #tpu.dot_dimension_numbers<[1], [1], [0], [0], [0, 0, 1, 0], [], []>} : vector<8x8xf32>, vector<8x8xf32>, vector<8x8xf32> -> vector<8x8xf32>
    %cst_10 = arith.constant dense<0xFF800000> : vector<8xf32>
    %26 = vector.multi_reduction <maximumf>, %25, %cst_10 [1] : vector<8x8xf32> to vector<8xf32>
    %27 = vector.shape_cast %26 : vector<8xf32> to vector<8x1xf32>
    %28 = vector.broadcast %27 : vector<8x1xf32> to vector<8x8xf32>
    %29 = arith.subf %25, %28 : vector<8x8xf32>
    %30 = math.exp %29 : vector<8x8xf32>
    %cst_11 = arith.constant dense<0.000000e+00> : vector<8xf32>
    %31 = vector.multi_reduction <add>, %30, %cst_11 [1] : vector<8x8xf32> to vector<8xf32>
    %32 = vector.shape_cast %31 : vector<8xf32> to vector<8x1xf32>
    %33 = tpu.reciprocal %32 {approx = true} : vector<8x1xf32> -> vector<8x1xf32>
    %34 = vector.broadcast %33 : vector<8x1xf32> to vector<8x8xf32>
    %35 = arith.mulf %30, %34 : vector<8x8xf32>
    %cst_12 = arith.constant dense<0.000000e+00> : vector<8x8xf32>
    %36 = tpu.matmul %35, %24, %cst_12 {dimension_numbers = #tpu.dot_dimension_numbers<[1], [0], [0], [1], [0, 0, 1, 1], [], []>} : vector<8x8xf32>, vector<8x8xf32>, vector<8x8xf32> -> vector<8x8xf32>
    %cst_13 = arith.constant 0.000000e+00 : f32
    %37 = vector.broadcast %cst_13 : f32 to vector<8x8xf32>
    %38 = arith.maximumf %36, %37 : vector<8x8xf32>
    %39 = vector.extract_strided_slice %4 {offsets = [0, 16], sizes = [8, 8], strides = [1, 1]} : vector<8x96xf32> to vector<8x8xf32>
    %40 = vector.extract_strided_slice %4 {offsets = [0, 48], sizes = [8, 8], strides = [1, 1]} : vector<8x96xf32> to vector<8x8xf32>
    %41 = vector.extract_strided_slice %4 {offsets = [0, 80], sizes = [8, 8], strides = [1, 1]} : vector<8x96xf32> to vector<8x8xf32>
    %cst_14 = arith.constant dense<0.000000e+00> : vector<8x8xf32>
    %42 = tpu.matmul %39, %40, %cst_14 {dimension_numbers = #tpu.dot_dimension_numbers<[1], [1], [0], [0], [0, 0, 1, 0], [], []>} : vector<8x8xf32>, vector<8x8xf32>, vector<8x8xf32> -> vector<8x8xf32>
    %cst_15 = arith.constant dense<0xFF800000> : vector<8xf32>
    %43 = vector.multi_reduction <maximumf>, %42, %cst_15 [1] : vector<8x8xf32> to vector<8xf32>
    %44 = vector.shape_cast %43 : vector<8xf32> to vector<8x1xf32>
    %45 = vector.broadcast %44 : vector<8x1xf32> to vector<8x8xf32>
    %46 = arith.subf %42, %45 : vector<8x8xf32>
    %47 = math.exp %46 : vector<8x8xf32>
    %cst_16 = arith.constant dense<0.000000e+00> : vector<8xf32>
    %48 = vector.multi_reduction <add>, %47, %cst_16 [1] : vector<8x8xf32> to vector<8xf32>
    %49 = vector.shape_cast %48 : vector<8xf32> to vector<8x1xf32>
    %50 = tpu.reciprocal %49 {approx = true} : vector<8x1xf32> -> vector<8x1xf32>
    %51 = vector.broadcast %50 : vector<8x1xf32> to vector<8x8xf32>
    %52 = arith.mulf %47, %51 : vector<8x8xf32>
    %cst_17 = arith.constant dense<0.000000e+00> : vector<8x8xf32>
    %53 = tpu.matmul %52, %41, %cst_17 {dimension_numbers = #tpu.dot_dimension_numbers<[1], [0], [0], [1], [0, 0, 1, 1], [], []>} : vector<8x8xf32>, vector<8x8xf32>, vector<8x8xf32> -> vector<8x8xf32>
    %cst_18 = arith.constant 0.000000e+00 : f32
    %54 = vector.broadcast %cst_18 : f32 to vector<8x8xf32>
    %55 = arith.maximumf %53, %54 : vector<8x8xf32>
    %56 = vector.extract_strided_slice %4 {offsets = [0, 24], sizes = [8, 8], strides = [1, 1]} : vector<8x96xf32> to vector<8x8xf32>
    %57 = vector.extract_strided_slice %4 {offsets = [0, 56], sizes = [8, 8], strides = [1, 1]} : vector<8x96xf32> to vector<8x8xf32>
    %58 = vector.extract_strided_slice %4 {offsets = [0, 88], sizes = [8, 8], strides = [1, 1]} : vector<8x96xf32> to vector<8x8xf32>
    %cst_19 = arith.constant dense<0.000000e+00> : vector<8x8xf32>
    %59 = tpu.matmul %56, %57, %cst_19 {dimension_numbers = #tpu.dot_dimension_numbers<[1], [1], [0], [0], [0, 0, 1, 0], [], []>} : vector<8x8xf32>, vector<8x8xf32>, vector<8x8xf32> -> vector<8x8xf32>
    %cst_20 = arith.constant dense<0xFF800000> : vector<8xf32>
    %60 = vector.multi_reduction <maximumf>, %59, %cst_20 [1] : vector<8x8xf32> to vector<8xf32>
    %61 = vector.shape_cast %60 : vector<8xf32> to vector<8x1xf32>
    %62 = vector.broadcast %61 : vector<8x1xf32> to vector<8x8xf32>
    %63 = arith.subf %59, %62 : vector<8x8xf32>
    %64 = math.exp %63 : vector<8x8xf32>
    %cst_21 = arith.constant dense<0.000000e+00> : vector<8xf32>
    %65 = vector.multi_reduction <add>, %64, %cst_21 [1] : vector<8x8xf32> to vector<8xf32>
    %66 = vector.shape_cast %65 : vector<8xf32> to vector<8x1xf32>
    %67 = tpu.reciprocal %66 {approx = true} : vector<8x1xf32> -> vector<8x1xf32>
    %68 = vector.broadcast %67 : vector<8x1xf32> to vector<8x8xf32>
    %69 = arith.mulf %64, %68 : vector<8x8xf32>
    %cst_22 = arith.constant dense<0.000000e+00> : vector<8x8xf32>
    %70 = tpu.matmul %69, %58, %cst_22 {dimension_numbers = #tpu.dot_dimension_numbers<[1], [0], [0], [1], [0, 0, 1, 1], [], []>} : vector<8x8xf32>, vector<8x8xf32>, vector<8x8xf32> -> vector<8x8xf32>
    %cst_23 = arith.constant 0.000000e+00 : f32
    %71 = vector.broadcast %cst_23 : f32 to vector<8x8xf32>
    %72 = arith.maximumf %70, %71 : vector<8x8xf32>
    %73 = tpu.concatenate %21, %38, %55, %72 in 1 : vector<8x8xf32>, vector<8x8xf32>, vector<8x8xf32>, vector<8x8xf32> -> vector<8x32xf32>
    %c0_24 = arith.constant 0 : index
    %c0_25 = arith.constant 0 : index
    %c0_26 = arith.constant 0 : index
    %74 = vector.load %arg3[%c0_24, %c0_25, %c0_26] : memref<2x8x32xf32, #tpu.memory_space<vmem>>, vector<1x8x32xf32>
    %75 = vector.shape_cast %74 : vector<1x8x32xf32> to vector<8x32xf32>
    %76 = vector.shape_cast %73 : vector<8x32xf32> to vector<1x8x32xf32>
    tpu.vector_store %arg3[%c0_24, %c0_25, %c0_26], %76 {strides = array<i32>} : memref<2x8x32xf32, #tpu.memory_space<vmem>>, vector<1x8x32xf32>,
    %77 = vector.extract_strided_slice %3 {offsets = [8, 0], sizes = [8, 96], strides = [1, 1]} : vector<16x96xf32> to vector<8x96xf32>
    %78 = vector.extract_strided_slice %77 {offsets = [0, 0], sizes = [8, 8], strides = [1, 1]} : vector<8x96xf32> to vector<8x8xf32>
    %79 = vector.extract_strided_slice %77 {offsets = [0, 32], sizes = [8, 8], strides = [1, 1]} : vector<8x96xf32> to vector<8x8xf32>
    %80 = vector.extract_strided_slice %77 {offsets = [0, 64], sizes = [8, 8], strides = [1, 1]} : vector<8x96xf32> to vector<8x8xf32>
    %cst_27 = arith.constant dense<0.000000e+00> : vector<8x8xf32>
    %81 = tpu.matmul %78, %79, %cst_27 {dimension_numbers = #tpu.dot_dimension_numbers<[1], [1], [0], [0], [0, 0, 1, 0], [], []>} : vector<8x8xf32>, vector<8x8xf32>, vector<8x8xf32> -> vector<8x8xf32>
    %cst_28 = arith.constant dense<0xFF800000> : vector<8xf32>
    %82 = vector.multi_reduction <maximumf>, %81, %cst_28 [1] : vector<8x8xf32> to vector<8xf32>
    %83 = vector.shape_cast %82 : vector<8xf32> to vector<8x1xf32>
    %84 = vector.broadcast %83 : vector<8x1xf32> to vector<8x8xf32>
    %85 = arith.subf %81, %84 : vector<8x8xf32>
    %86 = math.exp %85 : vector<8x8xf32>
    %cst_29 = arith.constant dense<0.000000e+00> : vector<8xf32>
    %87 = vector.multi_reduction <add>, %86, %cst_29 [1] : vector<8x8xf32> to vector<8xf32>
    %88 = vector.shape_cast %87 : vector<8xf32> to vector<8x1xf32>
    %89 = tpu.reciprocal %88 {approx = true} : vector<8x1xf32> -> vector<8x1xf32>
    %90 = vector.broadcast %89 : vector<8x1xf32> to vector<8x8xf32>
    %91 = arith.mulf %86, %90 : vector<8x8xf32>
    %cst_30 = arith.constant dense<0.000000e+00> : vector<8x8xf32>
    %92 = tpu.matmul %91, %80, %cst_30 {dimension_numbers = #tpu.dot_dimension_numbers<[1], [0], [0], [1], [0, 0, 1, 1], [], []>} : vector<8x8xf32>, vector<8x8xf32>, vector<8x8xf32> -> vector<8x8xf32>
    %cst_31 = arith.constant 0.000000e+00 : f32
    %93 = vector.broadcast %cst_31 : f32 to vector<8x8xf32>
    %94 = arith.maximumf %92, %93 : vector<8x8xf32>
    %95 = vector.extract_strided_slice %77 {offsets = [0, 8], sizes = [8, 8], strides = [1, 1]} : vector<8x96xf32> to vector<8x8xf32>
    %96 = vector.extract_strided_slice %77 {offsets = [0, 40], sizes = [8, 8], strides = [1, 1]} : vector<8x96xf32> to vector<8x8xf32>
    %97 = vector.extract_strided_slice %77 {offsets = [0, 72], sizes = [8, 8], strides = [1, 1]} : vector<8x96xf32> to vector<8x8xf32>
    %cst_32 = arith.constant dense<0.000000e+00> : vector<8x8xf32>
    %98 = tpu.matmul %95, %96, %cst_32 {dimension_numbers = #tpu.dot_dimension_numbers<[1], [1], [0], [0], [0, 0, 1, 0], [], []>} : vector<8x8xf32>, vector<8x8xf32>, vector<8x8xf32> -> vector<8x8xf32>
    %cst_33 = arith.constant dense<0xFF800000> : vector<8xf32>
    %99 = vector.multi_reduction <maximumf>, %98, %cst_33 [1] : vector<8x8xf32> to vector<8xf32>
    %100 = vector.shape_cast %99 : vector<8xf32> to vector<8x1xf32>
    %101 = vector.broadcast %100 : vector<8x1xf32> to vector<8x8xf32>
    %102 = arith.subf %98, %101 : vector<8x8xf32>
    %103 = math.exp %102 : vector<8x8xf32>
    %cst_34 = arith.constant dense<0.000000e+00> : vector<8xf32>
    %104 = vector.multi_reduction <add>, %103, %cst_34 [1] : vector<8x8xf32> to vector<8xf32>
    %105 = vector.shape_cast %104 : vector<8xf32> to vector<8x1xf32>
    %106 = tpu.reciprocal %105 {approx = true} : vector<8x1xf32> -> vector<8x1xf32>
    %107 = vector.broadcast %106 : vector<8x1xf32> to vector<8x8xf32>
    %108 = arith.mulf %103, %107 : vector<8x8xf32>
    %cst_35 = arith.constant dense<0.000000e+00> : vector<8x8xf32>
    %109 = tpu.matmul %108, %97, %cst_35 {dimension_numbers = #tpu.dot_dimension_numbers<[1], [0], [0], [1], [0, 0, 1, 1], [], []>} : vector<8x8xf32>, vector<8x8xf32>, vector<8x8xf32> -> vector<8x8xf32>
    %cst_36 = arith.constant 0.000000e+00 : f32
    %110 = vector.broadcast %cst_36 : f32 to vector<8x8xf32>
    %111 = arith.maximumf %109, %110 : vector<8x8xf32>
    %112 = vector.extract_strided_slice %77 {offsets = [0, 16], sizes = [8, 8], strides = [1, 1]} : vector<8x96xf32> to vector<8x8xf32>
    %113 = vector.extract_strided_slice %77 {offsets = [0, 48], sizes = [8, 8], strides = [1, 1]} : vector<8x96xf32> to vector<8x8xf32>
    %114 = vector.extract_strided_slice %77 {offsets = [0, 80], sizes = [8, 8], strides = [1, 1]} : vector<8x96xf32> to vector<8x8xf32>
    %cst_37 = arith.constant dense<0.000000e+00> : vector<8x8xf32>
    %115 = tpu.matmul %112, %113, %cst_37 {dimension_numbers = #tpu.dot_dimension_numbers<[1], [1], [0], [0], [0, 0, 1, 0], [], []>} : vector<8x8xf32>, vector<8x8xf32>, vector<8x8xf32> -> vector<8x8xf32>
    %cst_38 = arith.constant dense<0xFF800000> : vector<8xf32>
    %116 = vector.multi_reduction <maximumf>, %115, %cst_38 [1] : vector<8x8xf32> to vector<8xf32>
    %117 = vector.shape_cast %116 : vector<8xf32> to vector<8x1xf32>
    %118 = vector.broadcast %117 : vector<8x1xf32> to vector<8x8xf32>
    %119 = arith.subf %115, %118 : vector<8x8xf32>
    %120 = math.exp %119 : vector<8x8xf32>
    %cst_39 = arith.constant dense<0.000000e+00> : vector<8xf32>
    %121 = vector.multi_reduction <add>, %120, %cst_39 [1] : vector<8x8xf32> to vector<8xf32>
    %122 = vector.shape_cast %121 : vector<8xf32> to vector<8x1xf32>
    %123 = tpu.reciprocal %122 {approx = true} : vector<8x1xf32> -> vector<8x1xf32>
    %124 = vector.broadcast %123 : vector<8x1xf32> to vector<8x8xf32>
    %125 = arith.mulf %120, %124 : vector<8x8xf32>
    %cst_40 = arith.constant dense<0.000000e+00> : vector<8x8xf32>
    %126 = tpu.matmul %125, %114, %cst_40 {dimension_numbers = #tpu.dot_dimension_numbers<[1], [0], [0], [1], [0, 0, 1, 1], [], []>} : vector<8x8xf32>, vector<8x8xf32>, vector<8x8xf32> -> vector<8x8xf32>
    %cst_41 = arith.constant 0.000000e+00 : f32
    %127 = vector.broadcast %cst_41 : f32 to vector<8x8xf32>
    %128 = arith.maximumf %126, %127 : vector<8x8xf32>
    %129 = vector.extract_strided_slice %77 {offsets = [0, 24], sizes = [8, 8], strides = [1, 1]} : vector<8x96xf32> to vector<8x8xf32>
    %130 = vector.extract_strided_slice %77 {offsets = [0, 56], sizes = [8, 8], strides = [1, 1]} : vector<8x96xf32> to vector<8x8xf32>
    %131 = vector.extract_strided_slice %77 {offsets = [0, 88], sizes = [8, 8], strides = [1, 1]} : vector<8x96xf32> to vector<8x8xf32>
    %cst_42 = arith.constant dense<0.000000e+00> : vector<8x8xf32>
    %132 = tpu.matmul %129, %130, %cst_42 {dimension_numbers = #tpu.dot_dimension_numbers<[1], [1], [0], [0], [0, 0, 1, 0], [], []>} : vector<8x8xf32>, vector<8x8xf32>, vector<8x8xf32> -> vector<8x8xf32>
    %cst_43 = arith.constant dense<0xFF800000> : vector<8xf32>
    %133 = vector.multi_reduction <maximumf>, %132, %cst_43 [1] : vector<8x8xf32> to vector<8xf32>
    %134 = vector.shape_cast %133 : vector<8xf32> to vector<8x1xf32>
    %135 = vector.broadcast %134 : vector<8x1xf32> to vector<8x8xf32>
    %136 = arith.subf %132, %135 : vector<8x8xf32>
    %137 = math.exp %136 : vector<8x8xf32>
    %cst_44 = arith.constant dense<0.000000e+00> : vector<8xf32>
    %138 = vector.multi_reduction <add>, %137, %cst_44 [1] : vector<8x8xf32> to vector<8xf32>
    %139 = vector.shape_cast %138 : vector<8xf32> to vector<8x1xf32>
    %140 = tpu.reciprocal %139 {approx = true} : vector<8x1xf32> -> vector<8x1xf32>
    %141 = vector.broadcast %140 : vector<8x1xf32> to vector<8x8xf32>
    %142 = arith.mulf %137, %141 : vector<8x8xf32>
    %cst_45 = arith.constant dense<0.000000e+00> : vector<8x8xf32>
    %143 = tpu.matmul %142, %131, %cst_45 {dimension_numbers = #tpu.dot_dimension_numbers<[1], [0], [0], [1], [0, 0, 1, 1], [], []>} : vector<8x8xf32>, vector<8x8xf32>, vector<8x8xf32> -> vector<8x8xf32>
    %cst_46 = arith.constant 0.000000e+00 : f32
    %144 = vector.broadcast %cst_46 : f32 to vector<8x8xf32>
    %145 = arith.maximumf %143, %144 : vector<8x8xf32>
    %146 = tpu.concatenate %94, %111, %128, %145 in 1 : vector<8x8xf32>, vector<8x8xf32>, vector<8x8xf32>, vector<8x8xf32> -> vector<8x32xf32>
    %c1 = arith.constant 1 : index
    %c0_47 = arith.constant 0 : index
    %c0_48 = arith.constant 0 : index
    %147 = vector.load %arg3[%c1, %c0_47, %c0_48] : memref<2x8x32xf32, #tpu.memory_space<vmem>>, vector<1x8x32xf32>
    %148 = vector.shape_cast %147 : vector<1x8x32xf32> to vector<8x32xf32>
    %149 = vector.shape_cast %146 : vector<8x32xf32> to vector<1x8x32xf32>
    tpu.vector_store %arg3[%c1, %c0_47, %c0_48], %149 {strides = array<i32>} : memref<2x8x32xf32, #tpu.memory_space<vmem>>, vector<1x8x32xf32>,
    return
  }
  func.func @transform_0(%arg0: i32) -> (i32, i32, i32) {
    %c0_i32 = arith.constant 0 : i32
    %c0_i32_0 = arith.constant 0 : i32
    %c0_i32_1 = arith.constant 0 : i32
    return %arg0, %c0_i32, %c0_i32_0 : i32, i32, i32
  }
  func.func @transform_1(%arg0: i32) -> (i32, i32) {
    %c0_i32 = arith.constant 0 : i32
    %c0_i32_0 = arith.constant 0 : i32
    %c0_i32_1 = arith.constant 0 : i32
    return %c0_i32, %c0_i32_0 : i32, i32
  }
  func.func @transform_2(%arg0: i32) -> (i32, i32, i32) {
    %c0_i32 = arith.constant 0 : i32
    %c0_i32_0 = arith.constant 0 : i32
    %c0_i32_1 = arith.constant 0 : i32
    return %arg0, %c0_i32, %c0_i32_0 : i32, i32, i32
  }
}

</mosaic_0001>

<llo_original>
// kernel: tpu_custom_call.1
$region0: #{tpu_custom_call.1}
  #allocation0 [shape = 'u32[]', space=smem, size = 0x4, offset = 0x4, fixed_abs, tag = 'smem constant byte address 0x4 - core index']
  #allocation1 [shape = 'u32[72,128]{1,0:T(1,128)}', space=vmem, size = 0x9000, scoped, tag = 'internal scratch']
  %s0 = inlined_call_operand.hbm [shape: f32[2,8,32], index: 0, kind: input, shape index: {}]
  %s1 = inlined_call_operand.hbm [shape: f32[32,96], index: 1, kind: input, shape index: {}]
  %s2 = inlined_call_operand.hbm [shape: f32[2,8,32], index: 2, kind: output, shape index: {}]
  %s3 = sld [smem:[#allocation0]]
  $region26: #{tpu_custom_call.1} parent=0
    _
  %s5 = ssub.s32 1, %s3
  %s6 = scalar_select 0, %s5, %s3
  $region1: #{tpu_custom_call.1} parent=0
    #allocation2 [shape = 'u8[8192]{0}', space=vmem, size = 0x2000, scoped, tag = 'input window, operand 0, single buffered']
    #allocation3 [shape = 's32[1]{0}', space=sflag, size = 0x4, scoped, tag = 'scoped memory for tpu_custom_call.1']
    #allocation4 [shape = 's32[1]{0}', space=sflag, size = 0x4, scoped, tag = 'scoped memory for tpu_custom_call.1']
    #allocation5 [shape = 'u8[16384]{0}', space=vmem, size = 0x4000, scoped, tag = 'input window, operand 1, single buffered']
    #allocation6 [shape = 's32[1]{0}', space=sflag, size = 0x4, scoped, tag = 'scoped memory for tpu_custom_call.1']
    #allocation7 [shape = 'u8[8192]{0}', space=vmem, size = 0x2000, scoped, tag = 'output window, operand 0, single buffered']
    %7 = vsyncpa [#allocation3], 0
    %8 = vsyncpa [#allocation6], 0
    %9 = vsyncpa [#allocation4], 0
    // Predicated region
    $region2: #{tpu_custom_call.1} parent=1 // pred_check
      _
    $region3: #{tpu_custom_call.1} parent=1 // pred_check_branch
      %11 = sbr.rel (0) target = $region5
    $region4: #{tpu_custom_call.1} parent=1 // pred_region
      %13 = vsyncadd [#allocation3], 0
      %s14 = sshll.u32 %s0, 4
      %s15 = int_to_ptr.hbm [resolvable:$true] %s14
      %s16 = sshll.u32 [#allocation2], 4
      %s17 = int_to_ptr.vmem [resolvable:$true] %s16
      %22 = dma.hbm_to_vmem [thread:$0]  %s15, 256, %s17, [#allocation3], 128, 128, 8
    $region5: #{tpu_custom_call.1} parent=1 // pred_fallthru
      _
    // Predicated region
    $region6: #{tpu_custom_call.1} parent=1 // pred_check
      _
    $region7: #{tpu_custom_call.1} parent=1 // pred_check_branch
      %24 = sbr.rel (0) target = $region9
    $region8: #{tpu_custom_call.1} parent=1 // pred_region
      %26 = vsyncadd [#allocation6], 0
      %s27 = sshll.u32 %s1, 4
      %s28 = int_to_ptr.hbm [resolvable:$true] %s27
      %s29 = sshll.u32 [#allocation5], 4
      %s30 = int_to_ptr.vmem [resolvable:$true] %s29
      %35 = dma.hbm_to_vmem [thread:$0]  %s28, 512, %s30, [#allocation6], 128, 128, 8
    $region9: #{tpu_custom_call.1} parent=1 // pred_fallthru
      _
    // Predicated region
    $region10: #{tpu_custom_call.1} parent=1 // pred_check
      _
    $region11: #{tpu_custom_call.1} parent=1 // pred_check_branch
      %37 = sbr.rel (0) target = $region13
    $region12: #{tpu_custom_call.1} parent=1 // pred_region
      %39 = dma.done [#allocation3], 256
    $region13: #{tpu_custom_call.1} parent=1 // pred_fallthru
      _
    // Predicated region
    $region14: #{tpu_custom_call.1} parent=1 // pred_check
      _
    $region15: #{tpu_custom_call.1} parent=1 // pred_check_branch
      %41 = sbr.rel (0) target = $region17
    $region16: #{tpu_custom_call.1} parent=1 // pred_region
      %43 = dma.done [#allocation6], 512
    $region17: #{tpu_custom_call.1} parent=1 // pred_fallthru
      _
    %v44 = vld [vmem:[#allocation2] sm:$0xff]
    %v45 = vld [vmem:[#allocation2 + $0x8] sm:$0xff]
    %v46 = vld [vmem:[#allocation5] sm:$0xff]
    %v47 = vld [vmem:[#allocation5 + $0x8] sm:$0xff]
    %v48 = vld [vmem:[#allocation5 + $0x10] sm:$0xff]
    %v49 = vld [vmem:[#allocation5 + $0x18] sm:$0xff]
    %vm50 = vcmask 261120
    %v52 = vsel %vm50, %v44, 0
    %v55 = vsel %vm50, %v45, 0
    %57 = vmatpush.msra.mxu0 0.0
    %58 = vmatpush.msra.mxu0 0.0
    %59 = vmatpush.msra.mxu0 0.0
    %60 = vmatpush.msra.mxu0 0.0
    %61 = vmatpush.msra.mxu0 0.0
    %62 = vmatpush.msra.mxu0 0.0
    %63 = vmatpush.msra.mxu0 0.0
    %64 = vmatpush.msra.mxu0 0.0
    %65 = vmatpush.msra.mxu0 0.0
    %66 = vmatpush.msra.mxu0 0.0
    %67 = vmatpush.msra.mxu0 0.0
    %68 = vmatpush.msra.mxu0 0.0
    %69 = vmatpush.msra.mxu0 %v49
    %70 = vmatpush.msra.mxu0 %v48
    %71 = vmatpush.msra.mxu0 %v47
    %72 = vmatpush.msra.mxu0 %v46
    %73 = vmatmul.f32.gmra.mxu0 %v52
    %v74 = vpop.f32.mrf.mxu0
    %v75 = vadd.f32 0.0, %v74
    %76 = vmatmul.f32.gmra.mxu0 %v55
    %v77 = vpop.f32.mrf.mxu0
    %v78 = vadd.f32 0.0, %v77
    %79 = vdwg.mxu0
    %81 = vrot.lane.b32.xlu0 %v75, 96
    %v82 = vpop.permute.xlu0 %81
    %vm83 = vcmask 64512
    %v84 = vsel %vm83, %v75, 0
    %v86 = vsel %vm83, %v82, 0
    %88 = vmatpush.xpose.msra.mxu0 0.0
    %89 = vmatpush.xpose.msra.mxu0 0.0
    %90 = vmatpush.xpose.msra.mxu0 0.0
    %91 = vmatpush.xpose.msra.mxu0 0.0
    %92 = vmatpush.xpose.msra.mxu0 0.0
    %93 = vmatpush.xpose.msra.mxu0 0.0
    %94 = vmatpush.xpose.msra.mxu0 0.0
    %95 = vmatpush.xpose.msra.mxu0 0.0
    %96 = vmatpush.xpose.msra.mxu0 0.0
    %97 = vmatpush.xpose.msra.mxu0 0.0
    %98 = vmatpush.xpose.msra.mxu0 0.0
    %99 = vmatpush.xpose.msra.mxu0 0.0
    %100 = vmatpush.xpose.msra.mxu0 0.0
    %101 = vmatpush.xpose.msra.mxu0 0.0
    %102 = vmatpush.xpose.msra.mxu0 0.0
    %103 = vmatpush.xpose.msra.mxu0 %v86
    %104 = vmatmul.f32.gmra.mxu0 %v84
    %v105 = vpop.f32.mrf.mxu0
    %v106 = vadd.f32 0.0, %v105
    %107 = vdwg.mxu0
    %v108 = vsel %vm83, %v106, -inf
    %109 = vmax.xlane.f32.xlu0 %v108
    %v110 = vpop.xlane.xlu0 %109
    %v111 = vsub.f32 %v106, %v110
    %v112 = vmul.f32 %v111, 1.442695
    %v113 = vpow.pop %v112
    %v114 = vsel %vm83, %v113, 0.0
    %115 = vadd.xlane.f32.xlu0 %v114
    %v116 = vpop.xlane.xlu0 %115
    %v117 = vrcp.pop %v116
    %v118 = vmul.f32 %v113, %v117
    %119 = vrot.lane.b32.xlu0 %v75, 64
    %v120 = vpop.permute.xlu0 %119
    %v123 = vsel %vm83, %v118, 0
    %125 = vmatpush.msra.mxu0 0.0
    %126 = vmatpush.msra.mxu0 0.0
    %127 = vmatpush.msra.mxu0 0.0
    %128 = vmatpush.msra.mxu0 0.0
    %129 = vmatpush.msra.mxu0 0.0
    %130 = vmatpush.msra.mxu0 0.0
    %131 = vmatpush.msra.mxu0 0.0
    %132 = vmatpush.msra.mxu0 0.0
    %133 = vmatpush.msra.mxu0 0.0
    %134 = vmatpush.msra.mxu0 0.0
    %135 = vmatpush.msra.mxu0 0.0
    %136 = vmatpush.msra.mxu0 0.0
    %137 = vmatpush.msra.mxu0 0.0
    %138 = vmatpush.msra.mxu0 0.0
    %139 = vmatpush.msra.mxu0 0.0
    %140 = vmatpush.msra.mxu0 %v120
    %141 = vmatmul.f32.gmra.mxu0 %v123
    %v142 = vpop.f32.mrf.mxu0
    %v143 = vadd.f32 0.0, %v142
    %144 = vdwg.mxu0
    %v145 = vmax.f32 %v143, 0.0
    %146 = vrot.lane.b32.xlu0 %v75, 120
    %v147 = vpop.permute.xlu0 %146
    %148 = vrot.lane.b32.xlu0 %v75, 88
    %v149 = vpop.permute.xlu0 %148
    %v150 = vsel %vm83, %v147, 0
    %v152 = vsel %vm83, %v149, 0
    %154 = vmatpush.xpose.msra.mxu0 0.0
    %155 = vmatpush.xpose.msra.mxu0 0.0
    %156 = vmatpush.xpose.msra.mxu0 0.0
    %157 = vmatpush.xpose.msra.mxu0 0.0
    %158 = vmatpush.xpose.msra.mxu0 0.0
    %159 = vmatpush.xpose.msra.mxu0 0.0
    %160 = vmatpush.xpose.msra.mxu0 0.0
    %161 = vmatpush.xpose.msra.mxu0 0.0
    %162 = vmatpush.xpose.msra.mxu0 0.0
    %163 = vmatpush.xpose.msra.mxu0 0.0
    %164 = vmatpush.xpose.msra.mxu0 0.0
    %165 = vmatpush.xpose.msra.mxu0 0.0
    %166 = vmatpush.xpose.msra.mxu0 0.0
    %167 = vmatpush.xpose.msra.mxu0 0.0
    %168 = vmatpush.xpose.msra.mxu0 0.0
    %169 = vmatpush.xpose.msra.mxu0 %v152
    %170 = vmatmul.f32.gmra.mxu0 %v150
    %v171 = vpop.f32.mrf.mxu0
    %v172 = vadd.f32 0.0, %v171
    %173 = vdwg.mxu0
    %v174 = vsel %vm83, %v172, -inf
    %175 = vmax.xlane.f32.xlu0 %v174
    %v176 = vpop.xlane.xlu0 %175
    %v177 = vsub.f32 %v172, %v176
    %v178 = vmul.f32 %v177, 1.442695
    %v179 = vpow.pop %v178
    %v180 = vsel %vm83, %v179, 0.0
    %181 = vadd.xlane.f32.xlu0 %v180
    %v182 = vpop.xlane.xlu0 %181
    %v183 = vrcp.pop %v182
    %v184 = vmul.f32 %v179, %v183
    %185 = vrot.lane.b32.xlu0 %v75, 56
    %v186 = vpop.permute.xlu0 %185
    %v189 = vsel %vm83, %v184, 0
    %191 = vmatpush.msra.mxu0 0.0
    %192 = vmatpush.msra.mxu0 0.0
    %193 = vmatpush.msra.mxu0 0.0
    %194 = vmatpush.msra.mxu0 0.0
    %195 = vmatpush.msra.mxu0 0.0
    %196 = vmatpush.msra.mxu0 0.0
    %197 = vmatpush.msra.mxu0 0.0
    %198 = vmatpush.msra.mxu0 0.0
    %199 = vmatpush.msra.mxu0 0.0
    %200 = vmatpush.msra.mxu0 0.0
    %201 = vmatpush.msra.mxu0 0.0
    %202 = vmatpush.msra.mxu0 0.0
    %203 = vmatpush.msra.mxu0 0.0
    %204 = vmatpush.msra.mxu0 0.0
    %205 = vmatpush.msra.mxu0 0.0
    %206 = vmatpush.msra.mxu0 %v186
    %207 = vmatmul.f32.gmra.mxu0 %v189
    %v208 = vpop.f32.mrf.mxu0
    %v209 = vadd.f32 0.0, %v208
    %210 = vdwg.mxu0
    %v211 = vmax.f32 %v209, 0.0
    %212 = vrot.lane.b32.xlu0 %v75, 112
    %v213 = vpop.permute.xlu0 %212
    %214 = vrot.lane.b32.xlu0 %v75, 80
    %v215 = vpop.permute.xlu0 %214
    %v216 = vsel %vm83, %v213, 0
    %v218 = vsel %vm83, %v215, 0
    %220 = vmatpush.xpose.msra.mxu0 0.0
    %221 = vmatpush.xpose.msra.mxu0 0.0
    %222 = vmatpush.xpose.msra.mxu0 0.0
    %223 = vmatpush.xpose.msra.mxu0 0.0
    %224 = vmatpush.xpose.msra.mxu0 0.0
    %225 = vmatpush.xpose.msra.mxu0 0.0
    %226 = vmatpush.xpose.msra.mxu0 0.0
    %227 = vmatpush.xpose.msra.mxu0 0.0
    %228 = vmatpush.xpose.msra.mxu0 0.0
    %229 = vmatpush.xpose.msra.mxu0 0.0
    %230 = vmatpush.xpose.msra.mxu0 0.0
    %231 = vmatpush.xpose.msra.mxu0 0.0
    %232 = vmatpush.xpose.msra.mxu0 0.0
    %233 = vmatpush.xpose.msra.mxu0 0.0
    %234 = vmatpush.xpose.msra.mxu0 0.0
    %235 = vmatpush.xpose.msra.mxu0 %v218
    %236 = vmatmul.f32.gmra.mxu0 %v216
    %v237 = vpop.f32.mrf.mxu0
    %v238 = vadd.f32 0.0, %v237
    %239 = vdwg.mxu0
    %v240 = vsel %vm83, %v238, -inf
    %241 = vmax.xlane.f32.xlu0 %v240
    %v242 = vpop.xlane.xlu0 %241
    %v243 = vsub.f32 %v238, %v242
    %v244 = vmul.f32 %v243, 1.442695
    %v245 = vpow.pop %v244
    %v246 = vsel %vm83, %v245, 0.0
    %247 = vadd.xlane.f32.xlu0 %v246
    %v248 = vpop.xlane.xlu0 %247
    %v249 = vrcp.pop %v248
    %v250 = vmul.f32 %v245, %v249
    %251 = vrot.lane.b32.xlu0 %v75, 48
    %v252 = vpop.permute.xlu0 %251
    %v255 = vsel %vm83, %v250, 0
    %257 = vmatpush.msra.mxu0 0.0
    %258 = vmatpush.msra.mxu0 0.0
    %259 = vmatpush.msra.mxu0 0.0
    %260 = vmatpush.msra.mxu0 0.0
    %261 = vmatpush.msra.mxu0 0.0
    %262 = vmatpush.msra.mxu0 0.0
    %263 = vmatpush.msra.mxu0 0.0
    %264 = vmatpush.msra.mxu0 0.0
    %265 = vmatpush.msra.mxu0 0.0
    %266 = vmatpush.msra.mxu0 0.0
    %267 = vmatpush.msra.mxu0 0.0
    %268 = vmatpush.msra.mxu0 0.0
    %269 = vmatpush.msra.mxu0 0.0
    %270 = vmatpush.msra.mxu0 0.0
    %271 = vmatpush.msra.mxu0 0.0
    %272 = vmatpush.msra.mxu0 %v252
    %273 = vmatmul.f32.gmra.mxu0 %v255
    %v274 = vpop.f32.mrf.mxu0
    %v275 = vadd.f32 0.0, %v274
    %276 = vdwg.mxu0
    %v277 = vmax.f32 %v275, 0.0
    %278 = vrot.lane.b32.xlu0 %v75, 104
    %v279 = vpop.permute.xlu0 %278
    %280 = vrot.lane.b32.xlu0 %v75, 72
    %v281 = vpop.permute.xlu0 %280
    %v282 = vsel %vm83, %v279, 0
    %v284 = vsel %vm83, %v281, 0
    %286 = vmatpush.xpose.msra.mxu0 0.0
    %287 = vmatpush.xpose.msra.mxu0 0.0
    %288 = vmatpush.xpose.msra.mxu0 0.0
    %289 = vmatpush.xpose.msra.mxu0 0.0
    %290 = vmatpush.xpose.msra.mxu0 0.0
    %291 = vmatpush.xpose.msra.mxu0 0.0
    %292 = vmatpush.xpose.msra.mxu0 0.0
    %293 = vmatpush.xpose.msra.mxu0 0.0
    %294 = vmatpush.xpose.msra.mxu0 0.0
    %295 = vmatpush.xpose.msra.mxu0 0.0
    %296 = vmatpush.xpose.msra.mxu0 0.0
    %297 = vmatpush.xpose.msra.mxu0 0.0
    %298 = vmatpush.xpose.msra.mxu0 0.0
    %299 = vmatpush.xpose.msra.mxu0 0.0
    %300 = vmatpush.xpose.msra.mxu0 0.0
    %301 = vmatpush.xpose.msra.mxu0 %v284
    %302 = vmatmul.f32.gmra.mxu0 %v282
    %v303 = vpop.f32.mrf.mxu0
    %v304 = vadd.f32 0.0, %v303
    %305 = vdwg.mxu0
    %v306 = vsel %vm83, %v304, -inf
    %307 = vmax.xlane.f32.xlu0 %v306
    %v308 = vpop.xlane.xlu0 %307
    %v309 = vsub.f32 %v304, %v308
    %v310 = vmul.f32 %v309, 1.442695
    %v311 = vpow.pop %v310
    %v312 = vsel %vm83, %v311, 0.0
    %313 = vadd.xlane.f32.xlu0 %v312
    %v314 = vpop.xlane.xlu0 %313
    %v315 = vrcp.pop %v314
    %v316 = vmul.f32 %v311, %v315
    %317 = vrot.lane.b32.xlu0 %v75, 40
    %v318 = vpop.permute.xlu0 %317
    %v321 = vsel %vm83, %v316, 0
    %323 = vmatpush.msra.mxu0 0.0
    %324 = vmatpush.msra.mxu0 0.0
    %325 = vmatpush.msra.mxu0 0.0
    %326 = vmatpush.msra.mxu0 0.0
    %327 = vmatpush.msra.mxu0 0.0
    %328 = vmatpush.msra.mxu0 0.0
    %329 = vmatpush.msra.mxu0 0.0
    %330 = vmatpush.msra.mxu0 0.0
    %331 = vmatpush.msra.mxu0 0.0
    %332 = vmatpush.msra.mxu0 0.0
    %333 = vmatpush.msra.mxu0 0.0
    %334 = vmatpush.msra.mxu0 0.0
    %335 = vmatpush.msra.mxu0 0.0
    %336 = vmatpush.msra.mxu0 0.0
    %337 = vmatpush.msra.mxu0 0.0
    %338 = vmatpush.msra.mxu0 %v318
    %339 = vmatmul.f32.gmra.mxu0 %v321
    %v340 = vpop.f32.mrf.mxu0
    %v341 = vadd.f32 0.0, %v340
    %342 = vdwg.mxu0
    %v343 = vmax.f32 %v341, 0.0
    %345 = vrot.lane.b32.xlu0 %v211, 8
    %v346 = vpop.permute.xlu0 %345
    %349 = vrot.lane.b32.xlu0 %v277, 16
    %v350 = vpop.permute.xlu0 %349
    %353 = vrot.lane.b32.xlu0 %v343, 24
    %v354 = vpop.permute.xlu0 %353
    %v356 = vsel %vm83, %v145, %v346
    %vm357 = vcmask 130048
    %v358 = vsel %vm357, %v356, %v350
    %vm359 = vcmask 195584
    %v360 = vsel %vm359, %v358, %v354
    %361 = vst.msk [vmem:[#allocation7] sm:$0xff] %vm50, %v360
    %363 = vrot.lane.b32.xlu0 %v78, 96
    %v364 = vpop.permute.xlu0 %363
    %v365 = vsel %vm83, %v78, 0
    %v367 = vsel %vm83, %v364, 0
    %369 = vmatpush.xpose.msra.mxu0 0.0
    %370 = vmatpush.xpose.msra.mxu0 0.0
    %371 = vmatpush.xpose.msra.mxu0 0.0
    %372 = vmatpush.xpose.msra.mxu0 0.0
    %373 = vmatpush.xpose.msra.mxu0 0.0
    %374 = vmatpush.xpose.msra.mxu0 0.0
    %375 = vmatpush.xpose.msra.mxu0 0.0
    %376 = vmatpush.xpose.msra.mxu0 0.0
    %377 = vmatpush.xpose.msra.mxu0 0.0
    %378 = vmatpush.xpose.msra.mxu0 0.0
    %379 = vmatpush.xpose.msra.mxu0 0.0
    %380 = vmatpush.xpose.msra.mxu0 0.0
    %381 = vmatpush.xpose.msra.mxu0 0.0
    %382 = vmatpush.xpose.msra.mxu0 0.0
    %383 = vmatpush.xpose.msra.mxu0 0.0
    %384 = vmatpush.xpose.msra.mxu0 %v367
    %385 = vmatmul.f32.gmra.mxu0 %v365
    %v386 = vpop.f32.mrf.mxu0
    %v387 = vadd.f32 0.0, %v386
    %388 = vdwg.mxu0
    %v389 = vsel %vm83, %v387, -inf
    %390 = vmax.xlane.f32.xlu0 %v389
    %v391 = vpop.xlane.xlu0 %390
    %v392 = vsub.f32 %v387, %v391
    %v393 = vmul.f32 %v392, 1.442695
    %v394 = vpow.pop %v393
    %v395 = vsel %vm83, %v394, 0.0
    %396 = vadd.xlane.f32.xlu0 %v395
    %v397 = vpop.xlane.xlu0 %396
    %v398 = vrcp.pop %v397
    %v399 = vmul.f32 %v394, %v398
    %400 = vrot.lane.b32.xlu0 %v78, 64
    %v401 = vpop.permute.xlu0 %400
    %v404 = vsel %vm83, %v399, 0
    %406 = vmatpush.msra.mxu0 0.0
    %407 = vmatpush.msra.mxu0 0.0
    %408 = vmatpush.msra.mxu0 0.0
    %409 = vmatpush.msra.mxu0 0.0
    %410 = vmatpush.msra.mxu0 0.0
    %411 = vmatpush.msra.mxu0 0.0
    %412 = vmatpush.msra.mxu0 0.0
    %413 = vmatpush.msra.mxu0 0.0
    %414 = vmatpush.msra.mxu0 0.0
    %415 = vmatpush.msra.mxu0 0.0
    %416 = vmatpush.msra.mxu0 0.0
    %417 = vmatpush.msra.mxu0 0.0
    %418 = vmatpush.msra.mxu0 0.0
    %419 = vmatpush.msra.mxu0 0.0
    %420 = vmatpush.msra.mxu0 0.0
    %421 = vmatpush.msra.mxu0 %v401
    %422 = vmatmul.f32.gmra.mxu0 %v404
    %v423 = vpop.f32.mrf.mxu0
    %v424 = vadd.f32 0.0, %v423
    %425 = vdwg.mxu0
    %v426 = vmax.f32 %v424, 0.0
    %427 = vrot.lane.b32.xlu0 %v78, 120
    %v428 = vpop.permute.xlu0 %427
    %429 = vrot.lane.b32.xlu0 %v78, 88
    %v430 = vpop.permute.xlu0 %429
    %v431 = vsel %vm83, %v428, 0
    %v433 = vsel %vm83, %v430, 0
    %435 = vmatpush.xpose.msra.mxu0 0.0
    %436 = vmatpush.xpose.msra.mxu0 0.0
    %437 = vmatpush.xpose.msra.mxu0 0.0
    %438 = vmatpush.xpose.msra.mxu0 0.0
    %439 = vmatpush.xpose.msra.mxu0 0.0
    %440 = vmatpush.xpose.msra.mxu0 0.0
    %441 = vmatpush.xpose.msra.mxu0 0.0
    %442 = vmatpush.xpose.msra.mxu0 0.0
    %443 = vmatpush.xpose.msra.mxu0 0.0
    %444 = vmatpush.xpose.msra.mxu0 0.0
    %445 = vmatpush.xpose.msra.mxu0 0.0
    %446 = vmatpush.xpose.msra.mxu0 0.0
    %447 = vmatpush.xpose.msra.mxu0 0.0
    %448 = vmatpush.xpose.msra.mxu0 0.0
    %449 = vmatpush.xpose.msra.mxu0 0.0
    %450 = vmatpush.xpose.msra.mxu0 %v433
    %451 = vmatmul.f32.gmra.mxu0 %v431
    %v452 = vpop.f32.mrf.mxu0
    %v453 = vadd.f32 0.0, %v452
    %454 = vdwg.mxu0
    %v455 = vsel %vm83, %v453, -inf
    %456 = vmax.xlane.f32.xlu0 %v455
    %v457 = vpop.xlane.xlu0 %456
    %v458 = vsub.f32 %v453, %v457
    %v459 = vmul.f32 %v458, 1.442695
    %v460 = vpow.pop %v459
    %v461 = vsel %vm83, %v460, 0.0
    %462 = vadd.xlane.f32.xlu0 %v461
    %v463 = vpop.xlane.xlu0 %462
    %v464 = vrcp.pop %v463
    %v465 = vmul.f32 %v460, %v464
    %466 = vrot.lane.b32.xlu0 %v78, 56
    %v467 = vpop.permute.xlu0 %466
    %v470 = vsel %vm83, %v465, 0
    %472 = vmatpush.msra.mxu0 0.0
    %473 = vmatpush.msra.mxu0 0.0
    %474 = vmatpush.msra.mxu0 0.0
    %475 = vmatpush.msra.mxu0 0.0
    %476 = vmatpush.msra.mxu0 0.0
    %477 = vmatpush.msra.mxu0 0.0
    %478 = vmatpush.msra.mxu0 0.0
    %479 = vmatpush.msra.mxu0 0.0
    %480 = vmatpush.msra.mxu0 0.0
    %481 = vmatpush.msra.mxu0 0.0
    %482 = vmatpush.msra.mxu0 0.0
    %483 = vmatpush.msra.mxu0 0.0
    %484 = vmatpush.msra.mxu0 0.0
    %485 = vmatpush.msra.mxu0 0.0
    %486 = vmatpush.msra.mxu0 0.0
    %487 = vmatpush.msra.mxu0 %v467
    %488 = vmatmul.f32.gmra.mxu0 %v470
    %v489 = vpop.f32.mrf.mxu0
    %v490 = vadd.f32 0.0, %v489
    %491 = vdwg.mxu0
    %v492 = vmax.f32 %v490, 0.0
    %493 = vrot.lane.b32.xlu0 %v78, 112
    %v494 = vpop.permute.xlu0 %493
    %495 = vrot.lane.b32.xlu0 %v78, 80
    %v496 = vpop.permute.xlu0 %495
    %v497 = vsel %vm83, %v494, 0
    %v499 = vsel %vm83, %v496, 0
    %501 = vmatpush.xpose.msra.mxu0 0.0
    %502 = vmatpush.xpose.msra.mxu0 0.0
    %503 = vmatpush.xpose.msra.mxu0 0.0
    %504 = vmatpush.xpose.msra.mxu0 0.0
    %505 = vmatpush.xpose.msra.mxu0 0.0
    %506 = vmatpush.xpose.msra.mxu0 0.0
    %507 = vmatpush.xpose.msra.mxu0 0.0
    %508 = vmatpush.xpose.msra.mxu0 0.0
    %509 = vmatpush.xpose.msra.mxu0 0.0
    %510 = vmatpush.xpose.msra.mxu0 0.0
    %511 = vmatpush.xpose.msra.mxu0 0.0
    %512 = vmatpush.xpose.msra.mxu0 0.0
    %513 = vmatpush.xpose.msra.mxu0 0.0
    %514 = vmatpush.xpose.msra.mxu0 0.0
    %515 = vmatpush.xpose.msra.mxu0 0.0
    %516 = vmatpush.xpose.msra.mxu0 %v499
    %517 = vmatmul.f32.gmra.mxu0 %v497
    %v518 = vpop.f32.mrf.mxu0
    %v519 = vadd.f32 0.0, %v518
    %520 = vdwg.mxu0
    %v521 = vsel %vm83, %v519, -inf
    %522 = vmax.xlane.f32.xlu0 %v521
    %v523 = vpop.xlane.xlu0 %522
    %v524 = vsub.f32 %v519, %v523
    %v525 = vmul.f32 %v524, 1.442695
    %v526 = vpow.pop %v525
    %v527 = vsel %vm83, %v526, 0.0
    %528 = vadd.xlane.f32.xlu0 %v527
    %v529 = vpop.xlane.xlu0 %528
    %v530 = vrcp.pop %v529
    %v531 = vmul.f32 %v526, %v530
    %532 = vrot.lane.b32.xlu0 %v78, 48
    %v533 = vpop.permute.xlu0 %532
    %v536 = vsel %vm83, %v531, 0
    %538 = vmatpush.msra.mxu0 0.0
    %539 = vmatpush.msra.mxu0 0.0
    %540 = vmatpush.msra.mxu0 0.0
    %541 = vmatpush.msra.mxu0 0.0
    %542 = vmatpush.msra.mxu0 0.0
    %543 = vmatpush.msra.mxu0 0.0
    %544 = vmatpush.msra.mxu0 0.0
    %545 = vmatpush.msra.mxu0 0.0
    %546 = vmatpush.msra.mxu0 0.0
    %547 = vmatpush.msra.mxu0 0.0
    %548 = vmatpush.msra.mxu0 0.0
    %549 = vmatpush.msra.mxu0 0.0
    %550 = vmatpush.msra.mxu0 0.0
    %551 = vmatpush.msra.mxu0 0.0
    %552 = vmatpush.msra.mxu0 0.0
    %553 = vmatpush.msra.mxu0 %v533
    %554 = vmatmul.f32.gmra.mxu0 %v536
    %v555 = vpop.f32.mrf.mxu0
    %v556 = vadd.f32 0.0, %v555
    %557 = vdwg.mxu0
    %v558 = vmax.f32 %v556, 0.0
    %559 = vrot.lane.b32.xlu0 %v78, 104
    %v560 = vpop.permute.xlu0 %559
    %561 = vrot.lane.b32.xlu0 %v78, 72
    %v562 = vpop.permute.xlu0 %561
    %v563 = vsel %vm83, %v560, 0
    %v565 = vsel %vm83, %v562, 0
    %567 = vmatpush.xpose.msra.mxu0 0.0
    %568 = vmatpush.xpose.msra.mxu0 0.0
    %569 = vmatpush.xpose.msra.mxu0 0.0
    %570 = vmatpush.xpose.msra.mxu0 0.0
    %571 = vmatpush.xpose.msra.mxu0 0.0
    %572 = vmatpush.xpose.msra.mxu0 0.0
    %573 = vmatpush.xpose.msra.mxu0 0.0
    %574 = vmatpush.xpose.msra.mxu0 0.0
    %575 = vmatpush.xpose.msra.mxu0 0.0
    %576 = vmatpush.xpose.msra.mxu0 0.0
    %577 = vmatpush.xpose.msra.mxu0 0.0
    %578 = vmatpush.xpose.msra.mxu0 0.0
    %579 = vmatpush.xpose.msra.mxu0 0.0
    %580 = vmatpush.xpose.msra.mxu0 0.0
    %581 = vmatpush.xpose.msra.mxu0 0.0
    %582 = vmatpush.xpose.msra.mxu0 %v565
    %583 = vmatmul.f32.gmra.mxu0 %v563
    %v584 = vpop.f32.mrf.mxu0
    %v585 = vadd.f32 0.0, %v584
    %586 = vdwg.mxu0
    %v587 = vsel %vm83, %v585, -inf
    %588 = vmax.xlane.f32.xlu0 %v587
    %v589 = vpop.xlane.xlu0 %588
    %v590 = vsub.f32 %v585, %v589
    %v591 = vmul.f32 %v590, 1.442695
    %v592 = vpow.pop %v591
    %v593 = vsel %vm83, %v592, 0.0
    %594 = vadd.xlane.f32.xlu0 %v593
    %v595 = vpop.xlane.xlu0 %594
    %v596 = vrcp.pop %v595
    %v597 = vmul.f32 %v592, %v596
    %598 = vrot.lane.b32.xlu0 %v78, 40
    %v599 = vpop.permute.xlu0 %598
    %v602 = vsel %vm83, %v597, 0
    %604 = vmatpush.msra.mxu0 0.0
    %605 = vmatpush.msra.mxu0 0.0
    %606 = vmatpush.msra.mxu0 0.0
    %607 = vmatpush.msra.mxu0 0.0
    %608 = vmatpush.msra.mxu0 0.0
    %609 = vmatpush.msra.mxu0 0.0
    %610 = vmatpush.msra.mxu0 0.0
    %611 = vmatpush.msra.mxu0 0.0
    %612 = vmatpush.msra.mxu0 0.0
    %613 = vmatpush.msra.mxu0 0.0
    %614 = vmatpush.msra.mxu0 0.0
    %615 = vmatpush.msra.mxu0 0.0
    %616 = vmatpush.msra.mxu0 0.0
    %617 = vmatpush.msra.mxu0 0.0
    %618 = vmatpush.msra.mxu0 0.0
    %619 = vmatpush.msra.mxu0 %v599
    %620 = vmatmul.f32.gmra.mxu0 %v602
    %v621 = vpop.f32.mrf.mxu0
    %v622 = vadd.f32 0.0, %v621
    %623 = vdwg.mxu0
    %v624 = vmax.f32 %v622, 0.0
    %626 = vrot.lane.b32.xlu0 %v492, 8
    %v627 = vpop.permute.xlu0 %626
    %630 = vrot.lane.b32.xlu0 %v558, 16
    %v631 = vpop.permute.xlu0 %630
    %634 = vrot.lane.b32.xlu0 %v624, 24
    %v635 = vpop.permute.xlu0 %634
    %v637 = vsel %vm83, %v426, %v627
    %v638 = vsel %vm357, %v637, %v631
    %v639 = vsel %vm359, %v638, %v635
    %s640 = scalar_lea.vmem [#allocation7], 8
    %641 = vst.msk [vmem:[%s640] sm:$0xff] %vm50, %v639
    // Predicated region
    $region18: #{tpu_custom_call.1} parent=1 // pred_check
      _
    $region19: #{tpu_custom_call.1} parent=1 // pred_check_branch
      %643 = sbr.rel (0) target = $region21
    $region20: #{tpu_custom_call.1} parent=1 // pred_region
      %645 = vsyncadd [#allocation4], 0
      %s646 = sshll.u32 [#allocation7], 4
      %s647 = int_to_ptr.vmem [resolvable:$true] %s646
      %s648 = sshll.u32 %s2, 4
      %s649 = int_to_ptr.hbm [resolvable:$true] %s648
      %654 = dma.vmem_to_hbm [thread:$0]  %s647, 256, %s649, [#allocation4], 128, 128, 8
    $region21: #{tpu_custom_call.1} parent=1 // pred_fallthru
      _
    // Predicated region
    $region22: #{tpu_custom_call.1} parent=1 // pred_check
      _
    $region23: #{tpu_custom_call.1} parent=1 // pred_check_branch
      %656 = sbr.rel (0) target = $region25
    $region24: #{tpu_custom_call.1} parent=1 // pred_region
      %658 = dma.done [#allocation4], 256
    $region25: #{tpu_custom_call.1} parent=1 // pred_fallthru
      _
    %659 = vsyncpa [#allocation3], 1
    %660 = vsyncpa [#allocation6], 1
    %661 = vsyncpa [#allocation4], 1

</llo_original>
